<compile_context>
chip_gen: v7x
topology: tpu7x:2x2x1
jax: 0.10.0
libtpu: 0.0.40
codegen_flags: <defaults>
</compile_context>

<pallas_src>
import math

import jax
import jax.numpy as jnp
from jax.experimental import pallas as pl
from jax.experimental.pallas import tpu as pltpu


# --------------------------------------------------------------------------- #
# Kernels
# --------------------------------------------------------------------------- #

def _conv1x1_kernel_single_k(w_ref, b_ref, x_ref, o_ref):
    """Whole Cin in one block.  w:(tn,Cin) b:(tn,1) x:(Cin,thw) o:(tn,thw)."""
    acc = jnp.dot(w_ref[...], x_ref[...], preferred_element_type=jnp.float32)
    o_ref[...] = (acc + b_ref[...].astype(jnp.float32)).astype(o_ref.dtype)


def _conv1x1_kernel_acc(w_ref, b_ref, x_ref, o_ref, acc_ref):
    """Cin-tiled path: f32 VMEM accumulator, init/finalize via pl.when."""
    k = pl.program_id(3)

    @pl.when(k == 0)
    def _init():
        acc_ref[...] = jnp.zeros_like(acc_ref)

    acc_ref[...] += jnp.dot(w_ref[...], x_ref[...],
                            preferred_element_type=jnp.float32)

    @pl.when(k == pl.num_programs(3) - 1)
    def _finalize():
        o_ref[...] = (acc_ref[...] + b_ref[...].astype(jnp.float32)
                      ).astype(o_ref.dtype)


def _conv1x1_kernel_batched(w_ref, b_ref, x_ref, o_ref):
    """Batch-folded small-feature-map path.  x:(bt,Cin,HW) o:(bt,Cout,HW)."""
    w = w_ref[...]
    bias = b_ref[...].astype(jnp.float32)
    for i in range(x_ref.shape[0]):           # static unroll over the batch tile
        acc = jnp.dot(w, x_ref[i], preferred_element_type=jnp.float32)
        o_ref[i] = (acc + bias).astype(o_ref.dtype)


# --------------------------------------------------------------------------- #
# Tile planning
# --------------------------------------------------------------------------- #

def _round_up(x, m):
    return -(-x // m) * m


def _vmem_budget():
    """Generation-aware VMEM budget (per TensorCore)."""
    try:
        cap = pltpu.get_tpu_info().vmem_capacity_bytes
    except Exception:
        cap = 64 * 1024 * 1024                 # v7x-sized fallback: safe everywhere
    limit = min(int(cap * 0.75), 100 * 1024 * 1024)   # ~48 MiB v7x, ~96 MiB v5e/v6e
    return limit, int(limit * 0.80)            # (compiler limit, tile-plan budget)


def _plan(B, Cin, Cout, HW, itemsize, budget):
    """Pick (tk, tn, t_hw, b_t) with honest VMEM accounting."""
    sub = 8 if itemsize >= 4 else (16 if itemsize == 2 else 32)

    # --- channel (K / N) tiles -------------------------------------------------
    tk = Cin
    if Cin > 1024:
        for cand in (1024, 512, 256, 128):     # MXU-aligned exact divisors
            if Cin % cand == 0:
                tk = cand
                break
        # TODO(synk): huge non-divisible Cin keeps one big K block; add ragged-K
        # masking if such shapes ever appear.
    tn = Cout if Cout <= 1024 else 1024        # ragged Cout tail is store-masked

    # --- bytes resident regardless of the HW tile (dbl-buffered weight + bias) -
    fixed = 2 * _round_up(tn, sub) * _round_up(tk, 128) * itemsize
    fixed += 2 * _round_up(tn, sub) * 128 * itemsize
    avail = max(budget - fixed, 1 << 20)

    # --- lane (H*W) tile: dbl-buffered x + out columns + one f32 acc column ----
    per_col = 2 * (_round_up(tk, sub) + _round_up(tn, sub)) * itemsize
    per_col += _round_up(tn, sub) * 4
    t = min(avail // per_col, 16384)           # big lane tiles amortize step cost
    if t >= HW:
        t_hw = HW
    else:
        t_hw = max(128, (t // 128) * 128)

    n_k = pl.cdiv(Cin, tk)
    n_n = pl.cdiv(Cout, tn)
    n_hw = pl.cdiv(HW, t_hw)

    # --- guarantee >= 2 parallel blocks so both v7x TensorCores get work -------
    if B * n_n * n_hw == 1 and HW >= 256:
        t_hw = _round_up(pl.cdiv(HW, 2), 128)
        n_hw = pl.cdiv(HW, t_hw)

    # --- batch folding for small feature maps / small channel counts -----------
    b_t = 1
    if (n_k == 1 and n_n == 1 and n_hw == 1
            and HW <= 2048 and max(Cin, Cout) <= 256):
        per_img = 2 * (_round_up(Cin, sub) + _round_up(Cout, sub)) \
            * _round_up(HW, 128) * itemsize
        per_img += _round_up(Cout, sub) * _round_up(HW, 128) * 4   # f32 temp
        b_t = int(max(1, min(avail // per_img, -(-B // 2), 16)))

    return tk, tn, t_hw, b_t


# --------------------------------------------------------------------------- #
# Wrapper
# --------------------------------------------------------------------------- #

def conv1x1_pallas(x_nchw, weight, bias):
    """1x1 conv, stride 1.  x:[B,Cin,H,W]  w:[Cout,Cin,1,1]  b:[Cout] -> [B,Cout,H,W]."""
    B, Cin, H, W = x_nchw.shape
    Cout = weight.shape[0]
    HW = H * W

    # Free reshapes only (merge contiguous trailing dims) -- no transpose, no pad.
    x3d = x_nchw.reshape(B, Cin, HW)
    w2d = weight.reshape(Cout, Cin)
    b2d = bias.reshape(Cout, 1)
    # TODO(synk): on v6e/v7x, cast x/w to bf16 upstream (before this call) to halve
    # HBM traffic; the accumulation below is already f32 so numerics stay sane.

    vmem_limit, budget = _vmem_budget()
    tk, tn, t_hw, b_t = _plan(B, Cin, Cout, HW, x_nchw.dtype.itemsize, budget)

    out_shape = jax.ShapeDtypeStruct((B, Cout, HW), x_nchw.dtype)

    def _params(sem):
        return pltpu.CompilerParams(dimension_semantics=sem,
                                    vmem_limit_bytes=vmem_limit)

    if b_t > 1:
        # ---- batch-folded small-HW path ------------------------------------- #
        out3d = pl.pallas_call(
            _conv1x1_kernel_batched,
            out_shape=out_shape,
            grid_spec=pltpu.PrefetchScalarGridSpec(
                num_scalar_prefetch=0,
                grid=(pl.cdiv(B, b_t),),
                in_specs=[
                    pl.BlockSpec((Cout, Cin), lambda i: (0, 0)),
                    pl.BlockSpec((Cout, 1), lambda i: (0, 0)),
                    pl.BlockSpec((b_t, Cin, HW), lambda i: (i, 0, 0)),
                ],
                out_specs=pl.BlockSpec((b_t, Cout, HW), lambda i: (i, 0, 0)),
            ),
            compiler_params=_params(("parallel",)),
        )(w2d, b2d, x3d)
    else:
        # ---- general path: grid (B, N-tiles, HW-tiles, K-tiles) -------------- #
        n_k = pl.cdiv(Cin, tk)
        grid = (B, pl.cdiv(Cout, tn), pl.cdiv(HW, t_hw), n_k)
        in_specs = [
            # Weight / bias panels: constant across b and j -> stay resident.
            pl.BlockSpec((tn, tk), lambda b, n, j, k: (n, k)),
            pl.BlockSpec((tn, 1), lambda b, n, j, k: (n, 0)),
            # Activation tile: squeezed batch dim, lane-dense H*W chunk.
            pl.BlockSpec((pl.Squeezed(), tk, t_hw), lambda b, n, j, k: (b, k, j)),
        ]
        out_specs = pl.BlockSpec((pl.Squeezed(), tn, t_hw),
                                 lambda b, n, j, k: (b, n, j))
        if n_k == 1:
            kernel, scratch = _conv1x1_kernel_single_k, []
        else:
            kernel = _conv1x1_kernel_acc
            scratch = [pltpu.VMEM((tn, t_hw), jnp.float32)]
        out3d = pl.pallas_call(
            kernel,
            out_shape=out_shape,
            grid_spec=pltpu.PrefetchScalarGridSpec(
                num_scalar_prefetch=0,
                grid=grid,
                in_specs=in_specs,
                out_specs=out_specs,
                scratch_shapes=scratch,
            ),
            compiler_params=_params(("parallel", "parallel", "parallel",
                                     "arbitrary")),
        )(w2d, b2d, x3d)

    return out3d.reshape(B, Cout, H, W)


# --------------------------------------------------------------------------- #
# Parameter init (mirrors nn.Conv2d defaults) and pure-JAX reference
# --------------------------------------------------------------------------- #

def init_mlp_params(key, dim_in, dim_out, dtype=jnp.float32):
    kw, kb = jax.random.split(key)
    fan_in = dim_in * 1 * 1
    bound_w = math.sqrt(6.0 / ((1 + 5.0) * fan_in))   # kaiming_uniform(a=sqrt(5))
    weight = jax.random.uniform(kw, (dim_out, dim_in, 1, 1),
                                minval=-bound_w, maxval=bound_w, dtype=dtype)
    bound_b = 1.0 / math.sqrt(fan_in)
    bias = jax.random.uniform(kb, (dim_out,),
                              minval=-bound_b, maxval=bound_b, dtype=dtype)
    return weight, bias


def _reference(x, weight, bias):
    Cout, Cin = weight.shape[0], weight.shape[1]
    return jnp.einsum("bihw,oi->bohw", x, weight.reshape(Cout, Cin),
                      precision=jax.lax.Precision.HIGHEST) \
        + bias.reshape(1, Cout, 1, 1)


def _check(x, weight, bias, atol, rtol):
    out = jax.block_until_ready(conv1x1_pallas(x, weight, bias))
    ref = _reference(x, weight, bias)
    assert out.shape == ref.shape, (out.shape, ref.shape)
    assert jnp.allclose(out, ref, atol=atol, rtol=rtol), \
        float(jnp.max(jnp.abs(out - ref)))


# --------------------------------------------------------------------------- #
# Self-test
# --------------------------------------------------------------------------- #

if __name__ == "__main__":
    key = jax.random.PRNGKey(0)
    k1x, k1p, k2x, k2p, k3x, k3w, k3b = jax.random.split(key, 7)

    # 1) Spec shape (B=2, Cin=4, Cout=8, 16x16): general single-K path, squeezed
    #    batch dim, lane-dense 256-wide stores.
    x1 = jax.random.normal(k1x, (2, 4, 16, 16), dtype=jnp.float32)
    w1, b1 = init_mlp_params(k1p, 4, 8)
    _check(x1, w1, b1, atol=1e-5, rtol=1e-5)

    # 2) Small feature map, larger batch (B=8, 8x8): batch-folded path
    #    (several images per grid step).
    x2 = jax.random.normal(k2x, (8, 4, 8, 8), dtype=jnp.float32)
    w2, b2 = init_mlp_params(k2p, 4, 8)
    _check(x2, w2, b2, atol=1e-5, rtol=1e-5)

    # 3) Large Cin (2048): K-tiled accumulator path + >=2-block HW split.
    #    Integer-valued f32 inputs make the result exact regardless of matmul
    #    precision, so the comparison is bit-tight.
    x3 = jax.random.randint(k3x, (1, 2048, 16, 16), -3, 4).astype(jnp.float32)
    w3 = jax.random.randint(k3w, (8, 2048, 1, 1), -2, 3).astype(jnp.float32)
    b3 = jax.random.randint(k3b, (8,), -2, 3).astype(jnp.float32)
    _check(x3, w3, b3, atol=1e-6, rtol=0.0)

    print("KERNEL_OK")
</pallas_src>

<mosaic_0001>
module attributes {stable_mosaic.version = 11 : i64} {
  func.func @_conv1x1_kernel_single_k(%arg0: i32, %arg1: i32, %arg2: i32, %arg3: i32, %arg4: memref<8x4xf32, #tpu.memory_space<vmem>>, %arg5: memref<8x1xf32, #tpu.memory_space<vmem>>, %arg6: memref<1x4x256xf32, #tpu.memory_space<vmem>>, %arg7: memref<1x8x256xf32, #tpu.memory_space<vmem>>) attributes {dimension_semantics = [#tpu.dimension_semantics<parallel>, #tpu.dimension_semantics<parallel>, #tpu.dimension_semantics<parallel>, #tpu.dimension_semantics<arbitrary>], iteration_bounds = array<i64: 2, 1, 1, 1>, scalar_prefetch = 0 : i64, scratch_operands = 0 : i64, tpu.core_type = #tpu.core_type<tc>, window_params = [{transform_indices = @transform_0, window_bounds = array<i64: 8, 4>}, {transform_indices = @transform_1, window_bounds = array<i64: 8, 1>}, {transform_indices = @transform_2, window_bounds = array<i64: 1, 4, 256>}, {transform_indices = @transform_3, window_bounds = array<i64: 1, 8, 256>}]} {
    %c0 = arith.constant 0 : index
    %c0_0 = arith.constant 0 : index
    %0 = vector.load %arg4[%c0, %c0_0] : memref<8x4xf32, #tpu.memory_space<vmem>>, vector<8x4xf32>
    %c0_1 = arith.constant 0 : index
    %c0_2 = arith.constant 0 : index
    %c0_3 = arith.constant 0 : index
    %1 = vector.load %arg6[%c0_1, %c0_2, %c0_3] : memref<1x4x256xf32, #tpu.memory_space<vmem>>, vector<1x4x256xf32>
    %2 = vector.shape_cast %1 : vector<1x4x256xf32> to vector<4x256xf32>
    %cst = arith.constant dense<0.000000e+00> : vector<8x256xf32>
    %3 = tpu.matmul %0, %2, %cst {dimension_numbers = #tpu.dot_dimension_numbers<[1], [0], [0], [1], [0, 0, 1, 1], [], []>} : vector<8x4xf32>, vector<4x256xf32>, vector<8x256xf32> -> vector<8x256xf32>
    %c0_4 = arith.constant 0 : index
    %c0_5 = arith.constant 0 : index
    %4 = vector.load %arg5[%c0_4, %c0_5] : memref<8x1xf32, #tpu.memory_space<vmem>>, vector<8x1xf32>
    %5 = vector.broadcast %4 : vector<8x1xf32> to vector<8x256xf32>
    %6 = arith.addf %3, %5 : vector<8x256xf32>
    %c0_6 = arith.constant 0 : index
    %c0_7 = arith.constant 0 : index
    %c0_8 = arith.constant 0 : index
    %7 = vector.load %arg7[%c0_6, %c0_7, %c0_8] : memref<1x8x256xf32, #tpu.memory_space<vmem>>, vector<1x8x256xf32>
    %8 = vector.shape_cast %7 : vector<1x8x256xf32> to vector<8x256xf32>
    %9 = vector.shape_cast %6 : vector<8x256xf32> to vector<1x8x256xf32>
    tpu.vector_store %arg7[%c0_6, %c0_7, %c0_8], %9 {strides = array<i32>} : memref<1x8x256xf32, #tpu.memory_space<vmem>>, vector<1x8x256xf32>,
    return
  }
  func.func @transform_0(%arg0: i32, %arg1: i32, %arg2: i32, %arg3: i32) -> (i32, i32) {
    %c0_i32 = arith.constant 0 : i32
    return %arg1, %arg3 : i32, i32
  }
  func.func @transform_1(%arg0: i32, %arg1: i32, %arg2: i32, %arg3: i32) -> (i32, i32) {
    %c0_i32 = arith.constant 0 : i32
    %c0_i32_0 = arith.constant 0 : i32
    return %arg1, %c0_i32 : i32, i32
  }
  func.func @transform_2(%arg0: i32, %arg1: i32, %arg2: i32, %arg3: i32) -> (i32, i32, i32) {
    %c0_i32 = arith.constant 0 : i32
    return %arg0, %arg3, %arg2 : i32, i32, i32
  }
  func.func @transform_3(%arg0: i32, %arg1: i32, %arg2: i32, %arg3: i32) -> (i32, i32, i32) {
    %c0_i32 = arith.constant 0 : i32
    return %arg0, %arg1, %arg2 : i32, i32, i32
  }
}

</mosaic_0001>

<llo_original>
// kernel: tpu_custom_call.1
$region0: #{tpu_custom_call.1}
  #allocation0 [shape = 'u32[]', space=smem, size = 0x4, offset = 0x4, fixed_abs, tag = 'smem constant byte address 0x4 - core index']
  #allocation1 [shape = 'u32[144,128]{1,0:T(1,128)}', space=vmem, size = 0x12000, scoped, tag = 'internal scratch']
  %s0 = inlined_call_operand.vmem [shape: f32[8,4], index: 0, kind: input, shape index: {}]
  %s1 = inlined_call_operand.vmem [shape: f32[8,1], index: 1, kind: input, shape index: {}]
  %s2 = inlined_call_operand.vmem [shape: f32[2,4,256], index: 2, kind: input, shape index: {}]
  %s3 = inlined_call_operand.hbm [shape: f32[2,8,256], index: 3, kind: output, shape index: {}]
  %s4 = sld [smem:[#allocation0]]
  $region45: #{tpu_custom_call.1} parent=0
    _
  %s6 = ssub.s32 1, %s4
  %s7 = scalar_select 0, %s6, %s4
  $region1: #{tpu_custom_call.1} parent=0
    #allocation2 [shape = 'u8[16384]{0}', space=vmem, size = 0x4000, scoped, tag = 'output window, operand 0']
    #allocation3 [shape = 's32[2]{0}', space=sflag, size = 0x8, scoped, tag = 'scoped memory for tpu_custom_call.1']
    %8 = vsyncpa [#allocation3], 0
    %s9 = scalar_lea.sflag [#allocation3], 1
    %10 = vsyncpa %s9, 0
    loop: start=0, step=1, limit=4
    $region2: #{tpu_custom_call.1} parent=1 // loop_pre_header
      _
    $region3: #{tpu_custom_call.1} parent=1 // loop_header
      %s12 = sphi 0, %s16
      %p13 = scmp.ge.s32.totalorder %s12, 4
      %s19 = sphi 0, %s45
      %s20 = sphi 0, %s41
      %s21 = sphi 0, %s37
      %s22 = sphi 0, %s33
      %s23 = sphi 0, %s19
      %s24 = sphi 0, %s20
      %s25 = sphi 0, %s21
      %s26 = sphi 0, %s22
      %s27 = sphi 0, %s23
      %s28 = sphi 0, %s24
      %s29 = sphi 0, %s25
      %s30 = sphi 0, %s26
      %s50 = sphi 0, %s52
      %s53 = sphi 0, %s50
      %s54 = sphi 0, %s53
      %s70 = sphi 0, %s54
      %s76 = sphi 0, %s78
      %s79 = sphi 0, %s76
      %s80 = sphi 0, %s79
      %s96 = sphi 0, %s80
      %s106 = sphi 0, %s108
      %s109 = sphi 0, %s106
      %s110 = sphi 0, %s109
      %s126 = sphi 0, %s110
      %s136 = sphi 0, %s138
      %s139 = sphi 0, %s136
      %s140 = sphi 0, %s139
      %s156 = sphi 0, %s140
    $region4: #{tpu_custom_call.1} parent=1 // loop_header_branch
      %15 = sbr.rel (%p13) target = $region8
    $region5: #{tpu_custom_call.1} parent=1 // loop_body
      %s17 = ssub.s32 %s12, 1
      %s18 = ssub.s32 %s12, 2
      %s31 = sadd.s32 1, %s22
      %p32 = scmp.ge.s32.totalorder %s31, 1
      %s33 = scalar_select %p32, 0, %s31
      %s34 = sadd.s32 1, %s21
      %s35 = scalar_select %p32, %s34, %s21
      %p36 = scmp.ge.s32.totalorder %s35, 1
      %s37 = scalar_select %p36, 0, %s35
      %s38 = sadd.s32 1, %s20
      %s39 = scalar_select %p36, %s38, %s20
      %p40 = scmp.ge.s32.totalorder %s39, 1
      %s41 = scalar_select %p40, 0, %s39
      %s42 = sadd.s32 1, %s19
      %s43 = scalar_select %p40, %s42, %s19
      %p44 = scmp.ge.s32.totalorder %s43, 2
      %s45 = scalar_select %p44, 0, %s43
      %s46 = ssub.s32 %s20, %s41
      %s47 = ssub.s32 %s22, %s33
      %s48 = sor.u32 %s46, %s47
      %p49 = scmp.eq.s32.totalorder %s48, 0
      %s51 = sadd.s32 %s50, 1
      %s52 = scalar_select %p49, %s50, %s51
      %p55 = pneg %p49
      %p56 = scmp.eq.s32.totalorder %s12, 1
      %p57 = por %p55, %p56
      %p58 = scmp.ne.s32.totalorder %s50, %s53
      %p59 = scmp.eq.s32.totalorder %s12, 0
      %p60 = por %p58, %p59
      %p61 = scmp.ne.s32.totalorder %s50, %s53
      %p62 = scmp.eq.s32.totalorder %s17, 1
      %p63 = por %p61, %p62
      %p64 = scmp.ne.s32.totalorder %s53, %s54
      %p65 = scmp.eq.s32.totalorder %s17, 0
      %p66 = por %p64, %p65
      %p67 = scmp.ne.s32.totalorder %s53, %s54
      %p68 = scmp.eq.s32.totalorder %s18, 1
      %p69 = por %p67, %p68
      %p71 = scmp.ne.s32.totalorder %s54, %s70
      %p72 = scmp.eq.s32.totalorder %s18, 0
      %p73 = por %p71, %p72
      %s74 = ssub.s32 %s20, %s41
      %p75 = scmp.eq.s32.totalorder %s74, 0
      %s77 = sadd.s32 %s76, 1
      %s78 = scalar_select %p75, %s76, %s77
      %p81 = pneg %p75
      %p82 = scmp.eq.s32.totalorder %s12, 1
      %p83 = por %p81, %p82
      %p84 = scmp.ne.s32.totalorder %s76, %s79
      %p85 = scmp.eq.s32.totalorder %s12, 0
      %p86 = por %p84, %p85
      %p87 = scmp.ne.s32.totalorder %s76, %s79
      %p88 = scmp.eq.s32.totalorder %s17, 1
      %p89 = por %p87, %p88
      %p90 = scmp.ne.s32.totalorder %s79, %s80
      %p91 = scmp.eq.s32.totalorder %s17, 0
      %p92 = por %p90, %p91
      %p93 = scmp.ne.s32.totalorder %s79, %s80
      %p94 = scmp.eq.s32.totalorder %s18, 1
      %p95 = por %p93, %p94
      %p97 = scmp.ne.s32.totalorder %s80, %s96
      %p98 = scmp.eq.s32.totalorder %s18, 0
      %p99 = por %p97, %p98
      %s100 = ssub.s32 %s19, %s45
      %s101 = ssub.s32 %s22, %s33
      %s102 = sor.u32 %s100, %s101
      %s103 = ssub.s32 %s21, %s37
      %s104 = sor.u32 %s102, %s103
      %p105 = scmp.eq.s32.totalorder %s104, 0
      %s107 = sadd.s32 %s106, 1
      %s108 = scalar_select %p105, %s106, %s107
      %p111 = pneg %p105
      %p112 = scmp.eq.s32.totalorder %s12, 1
      %p113 = por %p111, %p112
      %p114 = scmp.ne.s32.totalorder %s106, %s109
      %p115 = scmp.eq.s32.totalorder %s12, 0
      %p116 = por %p114, %p115
      %p117 = scmp.ne.s32.totalorder %s106, %s109
      %p118 = scmp.eq.s32.totalorder %s17, 1
      %p119 = por %p117, %p118
      %p120 = scmp.ne.s32.totalorder %s109, %s110
      %p121 = scmp.eq.s32.totalorder %s17, 0
      %p122 = por %p120, %p121
      %p123 = scmp.ne.s32.totalorder %s109, %s110
      %p124 = scmp.eq.s32.totalorder %s18, 1
      %p125 = por %p123, %p124
      %p127 = scmp.ne.s32.totalorder %s110, %s126
      %p128 = scmp.eq.s32.totalorder %s18, 0
      %p129 = por %p127, %p128
      %s130 = ssub.s32 %s19, %s45
      %s131 = ssub.s32 %s20, %s41
      %s132 = sor.u32 %s130, %s131
      %s133 = ssub.s32 %s21, %s37
      %s134 = sor.u32 %s132, %s133
      %p135 = scmp.eq.s32.totalorder %s134, 0
      %s137 = sadd.s32 %s136, 1
      %s138 = scalar_select %p135, %s136, %s137
      %p141 = pneg %p135
      %p142 = scmp.eq.s32.totalorder %s12, 1
      %p143 = por %p141, %p142
      %p144 = scmp.ne.s32.totalorder %s136, %s139
      %p145 = scmp.eq.s32.totalorder %s12, 0
      %p146 = por %p144, %p145
      %p147 = scmp.ne.s32.totalorder %s136, %s139
      %p148 = scmp.eq.s32.totalorder %s17, 1
      %p149 = por %p147, %p148
      %p150 = scmp.ne.s32.totalorder %s139, %s140
      %p151 = scmp.eq.s32.totalorder %s17, 0
      %p152 = por %p150, %p151
      %p153 = scmp.ne.s32.totalorder %s139, %s140
      %p154 = scmp.eq.s32.totalorder %s18, 1
      %p155 = por %p153, %p154
      %p157 = scmp.ne.s32.totalorder %s140, %s156
      %p158 = scmp.eq.s32.totalorder %s18, 0
      %p159 = por %p157, %p158
      %p160 = scmp.le.s32.totalorder 1, %s12
      %p161 = scmp.lt.s32.totalorder %s12, 3
      %p162 = pnand %p160, %p161
      %p163 = pneg %p162
      // Predicated region
      $region9: #{tpu_custom_call.1} parent=5 // pred_check
        _
      $region10: #{tpu_custom_call.1} parent=5 // pred_check_branch
        %165 = sbr.rel (%p162) target = $region12
      $region11: #{tpu_custom_call.1} parent=5 // pred_region
        %s166 = ssub.s32 %s12, 1
        // Predicated region
        $region13: #{tpu_custom_call.1} parent=11 // pred_check
          %p167 = pneg %p66
        $region14: #{tpu_custom_call.1} parent=11 // pred_check_branch
          %169 = sbr.rel (%p167) target = $region16
        $region15: #{tpu_custom_call.1} parent=11 // pred_region
          %p170 = scmp.lt.s32.totalorder %s24, 0
          %s171 = scalar_select %p170, %s24, 0
          %p172 = scmp.lt.s32.totalorder %s26, 0
          %s173 = scalar_select %p172, %s26, 0
          %s174 = sadd.s32 %s173, %s171
          %s175 = smul.addr %s174, 8
          %s176 = scalar_lea.vmem %s0, %s175
        $region16: #{tpu_custom_call.1} parent=11 // pred_fallthru
          _
        // Predicated region
        $region17: #{tpu_custom_call.1} parent=11 // pred_check
          %p177 = pneg %p92
        $region18: #{tpu_custom_call.1} parent=11 // pred_check_branch
          %179 = sbr.rel (%p177) target = $region20
        $region19: #{tpu_custom_call.1} parent=11 // pred_region
          %p180 = scmp.lt.s32.totalorder %s24, 0
          %s181 = scalar_select %p180, %s24, 0
          %s182 = smul.addr %s181, 8
          %s183 = scalar_lea.vmem %s1, %s182
        $region20: #{tpu_custom_call.1} parent=11 // pred_fallthru
          _
      $region12: #{tpu_custom_call.1} parent=5 // pred_fallthru
        _
      %p184 = scmp.lt.s32.totalorder %s12, 2
      // Predicated region
      $region21: #{tpu_custom_call.1} parent=5 // pred_check
        %p185 = pneg %p184
      $region22: #{tpu_custom_call.1} parent=5 // pred_check_branch
        %187 = sbr.rel (%p185) target = $region24
      $region23: #{tpu_custom_call.1} parent=5 // pred_region
        // Predicated region
        $region25: #{tpu_custom_call.1} parent=23 // pred_check
          %p188 = pneg %p116
        $region26: #{tpu_custom_call.1} parent=23 // pred_check_branch
          %190 = sbr.rel (%p188) target = $region28
        $region27: #{tpu_custom_call.1} parent=23 // pred_region
          %s191 = smul.u32 2, %s21
          %p192 = scmp.lt.s32.totalorder %s19, 1
          %s193 = scalar_select %p192, %s19, 1
          %p194 = scmp.lt.s32.totalorder %s22, 0
          %s195 = scalar_select %p194, %s22, 0
          %p196 = scmp.lt.s32.totalorder %s191, 1
          %s197 = scalar_select %p196, %s191, 1
          %s198 = smul.addr %s195, 2
          %s199 = sadd.s32 %s197, %s198
          %s200 = smul.addr %s193, 2
          %s201 = sadd.s32 %s199, %s200
          %s202 = smul.addr %s201, 4
          %s203 = scalar_lea.vmem %s2, %s202
          %s204 = smul.u32 2, %s21
        $region28: #{tpu_custom_call.1} parent=23 // pred_fallthru
          _
      $region24: #{tpu_custom_call.1} parent=5 // pred_fallthru
        _
      %p205 = scmp.le.s32.totalorder 1, %s12
      %p206 = scmp.lt.s32.totalorder %s12, 3
      %p207 = pnand %p205, %p206
      %p208 = pneg %p207
      // Predicated region
      $region29: #{tpu_custom_call.1} parent=5 // pred_check
        _
      $region30: #{tpu_custom_call.1} parent=5 // pred_check_branch
        %210 = sbr.rel (%p207) target = $region32
      $region31: #{tpu_custom_call.1} parent=5 // pred_region
        %s211 = ssub.s32 %s12, 1
        %p212 = scmp.lt.s32.totalorder %s24, 0
        %s213 = scalar_select %p212, %s24, 0
        %p214 = scmp.lt.s32.totalorder %s26, 0
        %s215 = scalar_select %p214, %s26, 0
        %s216 = sadd.s32 %s215, %s213
        %s217 = smul.addr %s216, 8
        %s218 = scalar_lea.vmem %s0, %s217
        %p219 = pneg %p66
        %p220 = pneg %p63
        %p221 = scmp.lt.s32.totalorder %s24, 0
        %s222 = scalar_select %p221, %s24, 0
        %s223 = smul.addr %s222, 8
        %s224 = scalar_lea.vmem %s1, %s223
        %p225 = pneg %p92
        %p226 = pneg %p89
        %s227 = smul.u32 2, %s25
        %p228 = scmp.lt.s32.totalorder %s23, 1
        %s229 = scalar_select %p228, %s23, 1
        %p230 = scmp.lt.s32.totalorder %s26, 0
        %s231 = scalar_select %p230, %s26, 0
        %p232 = scmp.lt.s32.totalorder %s227, 1
        %s233 = scalar_select %p232, %s227, 1
        %s234 = smul.addr %s231, 2
        %s235 = sadd.s32 %s233, %s234
        %s236 = smul.addr %s229, 2
        %s237 = sadd.s32 %s235, %s236
        %s238 = smul.addr %s237, 4
        %s239 = scalar_lea.vmem %s2, %s238
        %p240 = pneg %p122
        %p241 = pneg %p119
        %p242 = pneg %p152
        %p243 = pneg %p149
        %s244 = sand.u32 %s139, 1
        %s245 = scalar_lea.sflag [#allocation3], %s244
        %s246 = sand.u32 %s139, 1
        %s247 = smul.addr %s246, 16
        %s248 = scalar_lea.vmem [#allocation2], %s247
        %p249 = scmp.lt.s32.totalorder %s24, 0
        %s250 = scalar_select %p249, %s24, 0
        %p251 = scmp.lt.s32.totalorder %s26, 0
        %s252 = scalar_select %p251, %s26, 0
        %s253 = sadd.s32 %s252, %s250
        %s254 = smul.addr %s253, 8
        %s255 = scalar_lea.vmem %s0, %s254
        %p256 = scmp.lt.s32.totalorder %s24, 0
        %s257 = scalar_select %p256, %s24, 0
        %s258 = smul.addr %s257, 8
        %s259 = scalar_lea.vmem %s1, %s258
        %s260 = smul.u32 2, %s25
        %p261 = scmp.lt.s32.totalorder %s23, 1
        %s262 = scalar_select %p261, %s23, 1
        %p263 = scmp.lt.s32.totalorder %s26, 0
        %s264 = scalar_select %p263, %s26, 0
        %p265 = scmp.lt.s32.totalorder %s260, 1
        %s266 = scalar_select %p265, %s260, 1
        %s267 = smul.addr %s264, 2
        %s268 = sadd.s32 %s266, %s267
        %s269 = smul.addr %s262, 2
        %s270 = sadd.s32 %s268, %s269
        %s271 = smul.addr %s270, 4
        %s272 = scalar_lea.vmem %s2, %s271
        %s273 = smul.u32 2, %s25
        %s274 = smul.u32 2, %s25
        %v275 = vld [vmem:[%s255] sm:$0xff]
        %v276 = vld [vmem:[%s272] sm:$0xff]
        %v277 = vld [vmem:[%s259] sm:$0xff]
        %279 = vset.pattern.permute.xlu0 0
        %280 = vperm.xlu0 %279, %v277
        %v281 = vpop.permute.xlu0 %280
        %v284 = vcombine.high %v276, %v276
        %vm285 = vcmask 31744
        %v287 = vsel %vm285, %v275, 0
        %vm289 = vcmask 1043456
        %v290 = vsel %vm289, %v276, 0
        %v292 = vsel %vm289, %v284, 0
        %294 = vmatprep.subr.mxu0 %v292
        %295 = vmatpush1.msra.mxu0 %v290
        %296 = vmatprep.subr.mxu0 0.0
        %297 = vmatpush1.msra.mxu0 0.0
        %298 = vmatprep.subr.mxu0 0.0
        %299 = vmatpush1.msra.mxu0 0.0
        %300 = vmatprep.subr.mxu0 0.0
        %301 = vmatpush1.msra.mxu0 0.0
        %302 = vmatprep.subr.mxu0 0.0
        %303 = vmatpush1.msra.mxu0 0.0
        %304 = vmatprep.subr.mxu0 0.0
        %305 = vmatpush1.msra.mxu0 0.0
        %306 = vmatprep.subr.mxu0 0.0
        %307 = vmatpush1.msra.mxu0 0.0
        %308 = vmatprep.subr.mxu0 0.0
        %309 = vmatpush1.msra.mxu0 0.0
        %310 = vmatprep.subr.mxu0 0.0
        %311 = vmatpush1.msra.mxu0 0.0
        %312 = vmatprep.subr.mxu0 0.0
        %313 = vmatpush1.msra.mxu0 0.0
        %314 = vmatprep.subr.mxu0 0.0
        %315 = vmatpush1.msra.mxu0 0.0
        %316 = vmatprep.subr.mxu0 0.0
        %317 = vmatpush1.msra.mxu0 0.0
        %318 = vmatprep.subr.mxu0 0.0
        %319 = vmatpush1.msra.mxu0 0.0
        %320 = vmatprep.subr.mxu0 0.0
        %321 = vmatpush1.msra.mxu0 0.0
        %322 = vmatprep.subr.mxu0 0.0
        %323 = vmatpush1.msra.mxu0 0.0
        %324 = vmatprep.subr.mxu0 0.0
        %325 = vmatpush1.msra.mxu0 0.0
        %326 = vmatprep.subr.mxu0 0.0
        %327 = vmatpush1.msra.mxu0 0.0
        %328 = vmatprep.subr.mxu0 0.0
        %329 = vmatpush1.msra.mxu0 0.0
        %330 = vmatprep.subr.mxu0 0.0
        %331 = vmatpush1.msra.mxu0 0.0
        %332 = vmatprep.subr.mxu0 0.0
        %333 = vmatpush1.msra.mxu0 0.0
        %334 = vmatprep.subr.mxu0 0.0
        %335 = vmatpush1.msra.mxu0 0.0
        %336 = vmatprep.subr.mxu0 0.0
        %337 = vmatpush1.msra.mxu0 0.0
        %338 = vmatprep.subr.mxu0 0.0
        %339 = vmatpush1.msra.mxu0 0.0
        %340 = vmatprep.subr.mxu0 0.0
        %341 = vmatpush1.msra.mxu0 0.0
        %342 = vmatprep.subr.mxu0 0.0
        %343 = vmatpush1.msra.mxu0 0.0
        %344 = vmatprep.subr.mxu0 0.0
        %345 = vmatpush1.msra.mxu0 0.0
        %346 = vmatprep.subr.mxu0 0.0
        %347 = vmatpush1.msra.mxu0 0.0
        %348 = vmatprep.subr.mxu0 0.0
        %349 = vmatpush1.msra.mxu0 0.0
        %350 = vmatprep.subr.mxu0 0.0
        %351 = vmatpush1.msra.mxu0 0.0
        %352 = vmatprep.subr.mxu0 0.0
        %353 = vmatpush1.msra.mxu0 0.0
        %354 = vmatprep.subr.mxu0 0.0
        %355 = vmatpush1.msra.mxu0 0.0
        %356 = vmatprep.subr.mxu0 0.0
        %357 = vmatpush1.msra.mxu0 0.0
        %358 = vmatprep.mubr.f32.mxu0 0.0
        %359 = vmatmul.mubr.f32.gmra.mrb[0].mxu0 %v287
        %v360 = vpop.f32.mrb[0].mxu0
        %v361 = vadd.f32 %v281, %v360
        %v362 = vpop.f32.mrb[0].mxu0
        %v363 = vadd.f32 %v281, %v362
        %364 = vdwg.mxu0
        %365 = vst [vmem:[%s248] sm:$0xff] %v361
        %366 = vst [vmem:[%s248 + $0x8] sm:$0xff] %v363
        %s367 = sand.u32 %s139, 1
        %s368 = scalar_lea.sflag [#allocation3], %s367
        %s369 = sand.u32 %s139, 1
        %s370 = smul.addr %s369, 16
        %s371 = scalar_lea.vmem [#allocation2], %s370
        // Predicated region
        $region33: #{tpu_custom_call.1} parent=31 // pred_check
          %p372 = pneg %p149
        $region34: #{tpu_custom_call.1} parent=31 // pred_check_branch
          %374 = sbr.rel (%p372) target = $region36
        $region35: #{tpu_custom_call.1} parent=31 // pred_region
          %s375 = smul.u32 2, %s25
          %s377 = ssub.s32 256, 256
          %378 = vsyncadd %s368, %s377
          %s379 = smul.addr %s24, 2
          %s380 = sadd.s32 %s375, %s379
          %s381 = smul.addr %s23, 2
          %s382 = sadd.s32 %s380, %s381
          %s383 = smul.addr %s382, 128
          %s384 = scalar_lea.hbm %s3, %s383
          %s386 = sshll.u32 %s371, 4
          %s387 = int_to_ptr.vmem [resolvable:$true] %s386
          %389 = dma.vmem_to_hbm [thread:$0]  %s387, 256, %s384, %s368
        $region36: #{tpu_custom_call.1} parent=31 // pred_fallthru
          _
      $region32: #{tpu_custom_call.1} parent=5 // pred_fallthru
        _
      %p390 = scmp.le.s32.totalorder 2, %s12
      // Predicated region
      $region37: #{tpu_custom_call.1} parent=5 // pred_check
        %p391 = pneg %p390
      $region38: #{tpu_custom_call.1} parent=5 // pred_check_branch
        %393 = sbr.rel (%p391) target = $region40
      $region39: #{tpu_custom_call.1} parent=5 // pred_region
        %s394 = ssub.s32 %s12, 2
        // Predicated region
        $region41: #{tpu_custom_call.1} parent=39 // pred_check
          %p395 = pneg %p155
        $region42: #{tpu_custom_call.1} parent=39 // pred_check_branch
          %397 = sbr.rel (%p395) target = $region44
        $region43: #{tpu_custom_call.1} parent=39 // pred_region
          %s398 = sand.u32 %s140, 1
          %s399 = scalar_lea.sflag [#allocation3], %s398
          %s400 = sand.u32 %s140, 1
          %s401 = smul.addr %s400, 16
          %s402 = scalar_lea.vmem [#allocation2], %s401
          %403 = dma.done %s399, 256
        $region44: #{tpu_custom_call.1} parent=39 // pred_fallthru
          _
      $region40: #{tpu_custom_call.1} parent=5 // pred_fallthru
        _
    $region6: #{tpu_custom_call.1} parent=1 // loop_footer
      %s16 = sadd.s32 1, %s12
    $region7: #{tpu_custom_call.1} parent=1 // loop_footer_branch
      %11 = sbr.rel target = $region3
    $region8: #{tpu_custom_call.1} parent=1 // loop_exit
      _
    %404 = vsyncpa [#allocation3], 1
    %s405 = scalar_lea.sflag [#allocation3], 1
    %406 = vsyncpa %s405, 1

</llo_original>
